<compile_context>
chip_gen: v5e
topology: v5e:2x2
jax: 0.10.0
libtpu: 0.0.40
codegen_flags: <defaults>
</compile_context>

<pallas_src>
import jax
import jax.numpy as jnp
from jax.experimental import pallas as pl
from jax.experimental.pallas import tpu as pltpu

_MiB = 1024 * 1024


def _pointwise_conv_kernel(x_ref, w_ref, b_ref, o_ref):
    # x_ref: (TB, C_in, T)   w_ref: (C_out, C_in)   b_ref: (C_out, 1)
    # o_ref: (TB, C_out, T)
    w = w_ref[...]
    b = b_ref[...]                                    # (C_out, 1) -> bcast over T
    for i in range(x_ref.shape[0]):                   # TB is a small static count
        acc = jnp.dot(w, x_ref[i], preferred_element_type=jnp.float32)   # MXU
        o_ref[i] = (acc + b).astype(o_ref.dtype)      # bias add in f32


def _vmem_capacity_bytes():
    """Physical VMEM of the current chip; conservative fallback = 64 MiB (v7x)."""
    try:
        info = pltpu.get_tpu_info()
        for name in ("vmem_capacity_bytes", "vmem_size_bytes", "vmem_bytes"):
            cap = getattr(info, name, None)
            if cap:
                return int(cap)
    except Exception:
        pass
    return 64 * _MiB


def _plan_tiles(B, C_in, C_out, HW, itemsize):
    """Pick (T, TB, vmem_limit, single_buffer_wb) from a bytes-per-step budget."""
    vmem_cap = _vmem_capacity_bytes()
    # Safe declared-VMEM ceiling: ~3/4 of physical (≈48 MiB v7x, ≈96 MiB v5e/v6e).
    safe_ceiling = min((vmem_cap * 3) // 4, 96 * _MiB)

    wb_raw = (C_out * C_in + C_out) * itemsize
    single_buffer_wb = wb_raw > 1 * _MiB            # only matters for big weights
    wb_vmem = (1 if single_buffer_wb else 2) * wb_raw

    # Budget for the double-buffered x+o tiles.  Multi-MiB per-step HBM traffic
    # amortizes the ~0.35us/step overhead (needed on v7x's 3.2 TB/s HBM; cheap
    # on v5e/v6e which have 128 MiB VMEM to spare).
    db_budget = max(4 * _MiB, min(32 * _MiB, safe_ceiling - wb_vmem - 4 * _MiB))

    per_col = 2 * (C_in + C_out) * itemsize          # double-buffered bytes / column
    cap_cols = max(1, db_budget // per_col)

    if HW <= 128 or cap_cols >= HW:
        T = HW                                       # full spatial dim: legal block
    else:
        T = max(128, (min(cap_cols, HW) // 128) * 128)

    # Small-HW case: pack several batch images per step if budget allows.
    TB = 1
    per_img = 2 * (C_in + C_out) * T * itemsize
    if T == HW and B > 1:
        TB = int(min(B, 8, max(1, db_budget // max(1, per_img))))

    tiles_bytes = 2 * TB * (C_in + C_out) * T * itemsize   # double-buffered x+o
    need = tiles_bytes + wb_vmem
    vmem_limit = int(min(safe_ceiling, max(need + need // 2, 16 * _MiB)))
    return T, TB, vmem_limit, single_buffer_wb


def linear_1x1_conv(x_nchw, weight, bias):
    """Equivalent of nn.Conv2d(c_in, c_out, kernel_size=1, bias=True).

    x_nchw : [B, C_in, H, W]
    weight : [C_out, C_in, 1, 1]   (PyTorch layout)
    bias   : [C_out]
    returns: [B, C_out, H, W]
    """
    B, C_in, H, W = x_nchw.shape
    C_out = weight.shape[0]
    HW = H * W
    itemsize = jnp.dtype(x_nchw.dtype).itemsize

    # Free reshapes only (row-major NCHW: merging trailing H,W is a bitcast).
    x3 = x_nchw.reshape(B, C_in, HW)
    w_mat = weight.reshape(C_out, C_in)
    b_col = bias.reshape(C_out, 1)

    T, TB, vmem_limit, single_buffer_wb = _plan_tiles(B, C_in, C_out, HW, itemsize)
    n_b = pl.cdiv(B, TB)      # ragged last batch block: OOB writes are masked
    n_hw = pl.cdiv(HW, T)     # ragged last spatial tile: OOB writes are masked

    # Put the larger parallel axis first so the v7x megacore split always has
    # work (e.g. B == 1 -> spatial axis leads).
    if n_hw >= n_b:
        grid = (n_hw, n_b)
        xo_map = lambda j, b: (b, 0, j)
    else:
        grid = (n_b, n_hw)
        xo_map = lambda b, j: (b, 0, j)
    wb_map = lambda i, j: (0, 0)

    # Grid-invariant weight/bias: single-buffer them only when they are big
    # enough for the extra buffer to matter (halves resident weight VMEM).
    wb_kwargs = {"pipeline_mode": pl.Buffered(1)} if single_buffer_wb else {}

    cost = pl.CostEstimate(
        flops=2 * B * HW * C_in * C_out,
        transcendentals=0,
        bytes_accessed=(B * C_in * HW + C_out * C_in + C_out
                        + B * C_out * HW) * itemsize,
    )

    y3 = pl.pallas_call(
        _pointwise_conv_kernel,
        out_shape=jax.ShapeDtypeStruct((B, C_out, HW), x_nchw.dtype),
        grid_spec=pltpu.PrefetchScalarGridSpec(
            num_scalar_prefetch=0,
            grid=grid,
            in_specs=[
                pl.BlockSpec((TB, C_in, T), xo_map),
                pl.BlockSpec((C_out, C_in), wb_map, **wb_kwargs),
                pl.BlockSpec((C_out, 1), wb_map, **wb_kwargs),
            ],
            out_specs=pl.BlockSpec((TB, C_out, T), xo_map),
        ),
        compiler_params=pltpu.CompilerParams(
            dimension_semantics=("parallel", "parallel"),
            vmem_limit_bytes=vmem_limit,
        ),
        cost_estimate=cost,
    )(x3, w_mat, b_col)

    return y3.reshape(B, C_out, H, W)   # free reshape back to NCHW


if __name__ == "__main__":
    # Small, deterministic example consistent with the module's forward.
    B, C_in, C_out, H, W = 2, 4, 8, 16, 16

    key = jax.random.PRNGKey(0)
    kx, kw, kb = jax.random.split(key, 3)

    x = jax.random.normal(kx, (B, C_in, H, W), dtype=jnp.float32)
    # Deterministic "Conv2d" parameters (PyTorch layout [C_out, C_in, 1, 1]).
    fan_in = C_in  # kernel_size = 1x1
    bound = 1.0 / (fan_in ** 0.5)
    weight = jax.random.uniform(kw, (C_out, C_in, 1, 1),
                                minval=-bound, maxval=bound, dtype=jnp.float32)
    bias = jax.random.uniform(kb, (C_out,),
                              minval=-bound, maxval=bound, dtype=jnp.float32)

    y = jax.jit(linear_1x1_conv)(x, weight, bias)
    jax.block_until_ready(y)

    # Correctness check against a pure-JAX reference of Conv2d(1x1).
    ref = jnp.einsum("bchw,oc->bohw", x, weight.reshape(C_out, C_in)) \
        + bias.reshape(1, C_out, 1, 1)
    assert y.shape == (B, C_out, H, W)
    assert jnp.allclose(y, ref, atol=1e-5, rtol=1e-5)

    print("KERNEL_OK")
</pallas_src>

<mosaic_0001>
module attributes {stable_mosaic.version = 11 : i64} {
  func.func @_pointwise_conv_kernel(%arg0: i32, %arg1: i32, %arg2: memref<2x4x256xf32, #tpu.memory_space<vmem>>, %arg3: memref<8x4xf32, #tpu.memory_space<vmem>>, %arg4: memref<8x1xf32, #tpu.memory_space<vmem>>, %arg5: memref<2x8x256xf32, #tpu.memory_space<vmem>>) attributes {dimension_semantics = [#tpu.dimension_semantics<parallel>, #tpu.dimension_semantics<parallel>], iteration_bounds = array<i64: 1, 1>, scalar_prefetch = 0 : i64, scratch_operands = 0 : i64, tpu.core_type = #tpu.core_type<tc>, window_params = [{transform_indices = @transform_0, window_bounds = array<i64: 2, 4, 256>}, {pipeline_mode = #tpu.pipeline_mode<synchronous>, transform_indices = @transform_1, window_bounds = array<i64: 8, 4>}, {pipeline_mode = #tpu.pipeline_mode<synchronous>, transform_indices = @transform_2, window_bounds = array<i64: 8, 1>}, {transform_indices = @transform_3, window_bounds = array<i64: 2, 8, 256>}]} {
    %c0 = arith.constant 0 : index
    %c0_0 = arith.constant 0 : index
    %0 = vector.load %arg3[%c0, %c0_0] : memref<8x4xf32, #tpu.memory_space<vmem>>, vector<8x4xf32>
    %c0_1 = arith.constant 0 : index
    %c0_2 = arith.constant 0 : index
    %1 = vector.load %arg4[%c0_1, %c0_2] : memref<8x1xf32, #tpu.memory_space<vmem>>, vector<8x1xf32>
    %c0_3 = arith.constant 0 : index
    %c0_4 = arith.constant 0 : index
    %c0_5 = arith.constant 0 : index
    %2 = vector.load %arg2[%c0_3, %c0_4, %c0_5] : memref<2x4x256xf32, #tpu.memory_space<vmem>>, vector<1x4x256xf32>
    %3 = vector.shape_cast %2 : vector<1x4x256xf32> to vector<4x256xf32>
    %cst = arith.constant dense<0.000000e+00> : vector<8x256xf32>
    %4 = tpu.matmul %0, %3, %cst {dimension_numbers = #tpu.dot_dimension_numbers<[1], [0], [0], [1], [0, 0, 1, 1], [], []>} : vector<8x4xf32>, vector<4x256xf32>, vector<8x256xf32> -> vector<8x256xf32>
    %5 = vector.broadcast %1 : vector<8x1xf32> to vector<8x256xf32>
    %6 = arith.addf %4, %5 : vector<8x256xf32>
    %c0_6 = arith.constant 0 : index
    %c0_7 = arith.constant 0 : index
    %c0_8 = arith.constant 0 : index
    %7 = vector.load %arg5[%c0_6, %c0_7, %c0_8] : memref<2x8x256xf32, #tpu.memory_space<vmem>>, vector<1x8x256xf32>
    %8 = vector.shape_cast %7 : vector<1x8x256xf32> to vector<8x256xf32>
    %9 = vector.shape_cast %6 : vector<8x256xf32> to vector<1x8x256xf32>
    tpu.vector_store %arg5[%c0_6, %c0_7, %c0_8], %9 {strides = array<i32>} : memref<2x8x256xf32, #tpu.memory_space<vmem>>, vector<1x8x256xf32>,
    %c1 = arith.constant 1 : index
    %c0_9 = arith.constant 0 : index
    %c0_10 = arith.constant 0 : index
    %10 = vector.load %arg2[%c1, %c0_9, %c0_10] : memref<2x4x256xf32, #tpu.memory_space<vmem>>, vector<1x4x256xf32>
    %11 = vector.shape_cast %10 : vector<1x4x256xf32> to vector<4x256xf32>
    %cst_11 = arith.constant dense<0.000000e+00> : vector<8x256xf32>
    %12 = tpu.matmul %0, %11, %cst_11 {dimension_numbers = #tpu.dot_dimension_numbers<[1], [0], [0], [1], [0, 0, 1, 1], [], []>} : vector<8x4xf32>, vector<4x256xf32>, vector<8x256xf32> -> vector<8x256xf32>
    %13 = vector.broadcast %1 : vector<8x1xf32> to vector<8x256xf32>
    %14 = arith.addf %12, %13 : vector<8x256xf32>
    %c1_12 = arith.constant 1 : index
    %c0_13 = arith.constant 0 : index
    %c0_14 = arith.constant 0 : index
    %15 = vector.load %arg5[%c1_12, %c0_13, %c0_14] : memref<2x8x256xf32, #tpu.memory_space<vmem>>, vector<1x8x256xf32>
    %16 = vector.shape_cast %15 : vector<1x8x256xf32> to vector<8x256xf32>
    %17 = vector.shape_cast %14 : vector<8x256xf32> to vector<1x8x256xf32>
    tpu.vector_store %arg5[%c1_12, %c0_13, %c0_14], %17 {strides = array<i32>} : memref<2x8x256xf32, #tpu.memory_space<vmem>>, vector<1x8x256xf32>,
    return
  }
  func.func @transform_0(%arg0: i32, %arg1: i32) -> (i32, i32, i32) {
    %c0_i32 = arith.constant 0 : i32
    %c0_i32_0 = arith.constant 0 : i32
    return %arg1, %c0_i32, %arg0 : i32, i32, i32
  }
  func.func @transform_1(%arg0: i32, %arg1: i32) -> (i32, i32) {
    %c0_i32 = arith.constant 0 : i32
    %c0_i32_0 = arith.constant 0 : i32
    %c0_i32_1 = arith.constant 0 : i32
    return %c0_i32, %c0_i32_0 : i32, i32
  }
  func.func @transform_2(%arg0: i32, %arg1: i32) -> (i32, i32) {
    %c0_i32 = arith.constant 0 : i32
    %c0_i32_0 = arith.constant 0 : i32
    %c0_i32_1 = arith.constant 0 : i32
    return %c0_i32, %c0_i32_0 : i32, i32
  }
  func.func @transform_3(%arg0: i32, %arg1: i32) -> (i32, i32, i32) {
    %c0_i32 = arith.constant 0 : i32
    %c0_i32_0 = arith.constant 0 : i32
    return %arg1, %c0_i32, %arg0 : i32, i32, i32
  }
}

</mosaic_0001>

<llo_original>
// kernel: linear_1x1_conv.1
$region0: #{linear_1x1_conv.1}
  #allocation0 [shape = 'u32[]', space=smem, size = 0x4, offset = 0x4, fixed_abs, tag = 'smem constant byte address 0x4 - core index']
  #allocation1 [shape = 'u32[72,128]{1,0:T(1,128)}', space=vmem, size = 0x9000, scoped, tag = 'internal scratch']
  %s0 = inlined_call_operand.vmem [shape: f32[2,4,256], index: 0, kind: input, shape index: {}]
  %s1 = inlined_call_operand.vmem [shape: f32[8,4], index: 1, kind: input, shape index: {}]
  %s2 = inlined_call_operand.vmem [shape: f32[8,1], index: 2, kind: input, shape index: {}]
  %s3 = inlined_call_operand.vmem [shape: f32[2,8,256], index: 3, kind: output, shape index: {}]
  %s4 = sld [smem:[#allocation0]]
  $region22: #{linear_1x1_conv.1} parent=0
    _
  %s6 = ssub.s32 1, %s4
  %s7 = scalar_select 0, %s6, %s4
  // Predicated region
  $region2: #{linear_1x1_conv.1} parent=0 // pred_check
    _
  $region3: #{linear_1x1_conv.1} parent=0 // pred_check_branch
    %9 = sbr.rel (0) target = $region5
  $region4: #{linear_1x1_conv.1} parent=0 // pred_region
    _
  $region5: #{linear_1x1_conv.1} parent=0 // pred_fallthru
    _
  // Predicated region
  $region6: #{linear_1x1_conv.1} parent=0 // pred_check
    _
  $region7: #{linear_1x1_conv.1} parent=0 // pred_check_branch
    %11 = sbr.rel (0) target = $region9
  $region8: #{linear_1x1_conv.1} parent=0 // pred_region
    _
  $region9: #{linear_1x1_conv.1} parent=0 // pred_fallthru
    _
  // Predicated region
  $region10: #{linear_1x1_conv.1} parent=0 // pred_check
    _
  $region11: #{linear_1x1_conv.1} parent=0 // pred_check_branch
    %13 = sbr.rel (0) target = $region13
  $region12: #{linear_1x1_conv.1} parent=0 // pred_region
    _
  $region13: #{linear_1x1_conv.1} parent=0 // pred_fallthru
    _
  %v14 = vld [vmem:[%s1] sm:$0xff]
  %v15 = vld [vmem:[%s2] sm:$0xff]
  %v16 = vld [vmem:[%s0] sm:$0xff]
  %18 = vset.pattern.permute.xlu0 0
  %19 = vperm.xlu0 %18, %v15
  %v20 = vpop.permute.xlu0 %19
  %23 = vst [vmem:[#allocation1] ss:$2 sm:$0xff] %v16
  %v24 = vld.sshfl [vmem:[#allocation1] sm:$0xff pattern:$0x75316420]
  %v25 = vld.sshfl [vmem:[#allocation1 + $0x8] sm:$0xff pattern:$0x75316420]
  %vm26 = vcmask 31744
  %v28 = vsel %vm26, %v14, 0
  %vm30 = vcmask 1043456
  %v31 = vsel %vm30, %v24, 0
  %v33 = vsel %vm30, %v25, 0
  %35 = vmatpush.msra.mxu0 0.0
  %36 = vmatpush.msra.mxu0 0.0
  %37 = vmatpush.msra.mxu0 0.0
  %38 = vmatpush.msra.mxu0 0.0
  %39 = vmatpush.msra.mxu0 0.0
  %40 = vmatpush.msra.mxu0 0.0
  %41 = vmatpush.msra.mxu0 0.0
  %42 = vmatpush.msra.mxu0 0.0
  %43 = vmatpush.msra.mxu0 0.0
  %44 = vmatpush.msra.mxu0 0.0
  %45 = vmatpush.msra.mxu0 0.0
  %46 = vmatpush.msra.mxu0 0.0
  %47 = vmatpush.msra.mxu0 0.0
  %48 = vmatpush.msra.mxu0 0.0
  %49 = vmatpush.msra.mxu0 0.0
  %50 = vmatpush.msra.mxu0 %v31
  %51 = vmatmul.f32.gmra.mxu0 %v28
  %v52 = vpop.f32.mrf.mxu0
  %v53 = vadd.f32 %v20, %v52
  %54 = vdwg.mxu0
  %55 = vmatpush.msra.mxu0 0.0
  %56 = vmatpush.msra.mxu0 0.0
  %57 = vmatpush.msra.mxu0 0.0
  %58 = vmatpush.msra.mxu0 0.0
  %59 = vmatpush.msra.mxu0 0.0
  %60 = vmatpush.msra.mxu0 0.0
  %61 = vmatpush.msra.mxu0 0.0
  %62 = vmatpush.msra.mxu0 0.0
  %63 = vmatpush.msra.mxu0 0.0
  %64 = vmatpush.msra.mxu0 0.0
  %65 = vmatpush.msra.mxu0 0.0
  %66 = vmatpush.msra.mxu0 0.0
  %67 = vmatpush.msra.mxu0 0.0
  %68 = vmatpush.msra.mxu0 0.0
  %69 = vmatpush.msra.mxu0 0.0
  %70 = vmatpush.msra.mxu0 %v33
  %71 = vmatmul.f32.gmra.mxu0 %v28
  %v72 = vpop.f32.mrf.mxu0
  %v73 = vadd.f32 %v20, %v72
  %74 = vdwg.mxu0
  %75 = vst [vmem:[%s3] sm:$0xff] %v53
  %76 = vst [vmem:[%s3 + $0x8] sm:$0xff] %v73
  %s77 = scalar_lea.vmem %s0, 8
  %v78 = vld [vmem:[%s77] sm:$0xff]
  %80 = vst [vmem:[#allocation1] ss:$2 sm:$0xff] %v78
  %v81 = vld.sshfl [vmem:[#allocation1] sm:$0xff pattern:$0x75316420]
  %v82 = vld.sshfl [vmem:[#allocation1 + $0x8] sm:$0xff pattern:$0x75316420]
  %v83 = vsel %vm30, %v81, 0
  %v85 = vsel %vm30, %v82, 0
  %87 = vmatpush.msra.mxu0 0.0
  %88 = vmatpush.msra.mxu0 0.0
  %89 = vmatpush.msra.mxu0 0.0
  %90 = vmatpush.msra.mxu0 0.0
  %91 = vmatpush.msra.mxu0 0.0
  %92 = vmatpush.msra.mxu0 0.0
  %93 = vmatpush.msra.mxu0 0.0
  %94 = vmatpush.msra.mxu0 0.0
  %95 = vmatpush.msra.mxu0 0.0
  %96 = vmatpush.msra.mxu0 0.0
  %97 = vmatpush.msra.mxu0 0.0
  %98 = vmatpush.msra.mxu0 0.0
  %99 = vmatpush.msra.mxu0 0.0
  %100 = vmatpush.msra.mxu0 0.0
  %101 = vmatpush.msra.mxu0 0.0
  %102 = vmatpush.msra.mxu0 %v83
  %103 = vmatmul.f32.gmra.mxu0 %v28
  %v104 = vpop.f32.mrf.mxu0
  %v105 = vadd.f32 %v20, %v104
  %106 = vdwg.mxu0
  %107 = vmatpush.msra.mxu0 0.0
  %108 = vmatpush.msra.mxu0 0.0
  %109 = vmatpush.msra.mxu0 0.0
  %110 = vmatpush.msra.mxu0 0.0
  %111 = vmatpush.msra.mxu0 0.0
  %112 = vmatpush.msra.mxu0 0.0
  %113 = vmatpush.msra.mxu0 0.0
  %114 = vmatpush.msra.mxu0 0.0
  %115 = vmatpush.msra.mxu0 0.0
  %116 = vmatpush.msra.mxu0 0.0
  %117 = vmatpush.msra.mxu0 0.0
  %118 = vmatpush.msra.mxu0 0.0
  %119 = vmatpush.msra.mxu0 0.0
  %120 = vmatpush.msra.mxu0 0.0
  %121 = vmatpush.msra.mxu0 0.0
  %122 = vmatpush.msra.mxu0 %v85
  %123 = vmatmul.f32.gmra.mxu0 %v28
  %v124 = vpop.f32.mrf.mxu0
  %v125 = vadd.f32 %v20, %v124
  %126 = vdwg.mxu0
  %s127 = scalar_lea.vmem %s3, 16
  %128 = vst [vmem:[%s127] sm:$0xff] %v105
  %129 = vst [vmem:[%s127 + $0x8] sm:$0xff] %v125
  // Predicated region
  $region14: #{linear_1x1_conv.1} parent=0 // pred_check
    _
  $region15: #{linear_1x1_conv.1} parent=0 // pred_check_branch
    %131 = sbr.rel (0) target = $region17
  $region16: #{linear_1x1_conv.1} parent=0 // pred_region
    _
  $region17: #{linear_1x1_conv.1} parent=0 // pred_fallthru
    _
  // Predicated region
  $region18: #{linear_1x1_conv.1} parent=0 // pred_check
    _
  $region19: #{linear_1x1_conv.1} parent=0 // pred_check_branch
    %133 = sbr.rel (0) target = $region21
  $region20: #{linear_1x1_conv.1} parent=0 // pred_region
    _
  $region21: #{linear_1x1_conv.1} parent=0 // pred_fallthru
    _

</llo_original>
